<compile_context>
chip_gen: v7x
topology: tpu7x:2x2x1
jax: 0.10.0
libtpu: 0.0.40
codegen_flags: <defaults>
</compile_context>

<pallas_src>
import jax
import jax.numpy as jnp
from jax.experimental import pallas as pl
from jax.experimental.pallas import tpu as pltpu


def _round_up(x, m):
    return (x + m - 1) // m * m


# ----------------------------- Pallas kernel --------------------------------
def _mlp_kernel(x_ref,
                w1_ref, s1_ref,
                w2_ref, s2_ref,
                w3_ref, s3_ref,
                w4_ref, b4_ref,
                out_ref):
    # fc1 (+ folded bn_cont + bias + bn1) -> relu   (bf16 matmul, f32 accum)
    h = jnp.dot(x_ref[...], w1_ref[...], preferred_element_type=jnp.float32)
    h = jnp.maximum(h + s1_ref[...], 0.0)

    # fc2 (+ folded bias + bn2) -> relu
    h = jnp.dot(h.astype(jnp.bfloat16), w2_ref[...],
                preferred_element_type=jnp.float32)
    h = jnp.maximum(h + s2_ref[...], 0.0)

    # fc3 (+ folded bias + bn3) -> relu
    h = jnp.dot(h.astype(jnp.bfloat16), w3_ref[...],
                preferred_element_type=jnp.float32)
    h = jnp.maximum(h + s3_ref[...], 0.0)

    # fc4 -> sigmoid   (N=1 matmul as VPU broadcast-multiply + lane reduction)
    logits = jnp.sum(h * w4_ref[...], axis=-1, keepdims=True) + b4_ref[...]
    out_ref[...] = jax.nn.sigmoid(logits)


def mlp_forward(x, kparams, *, tile_b_target=1024):
    """x: (B, F) float features.  Returns (B, 1) float32 probabilities."""
    B, F = x.shape
    tile_b = min(tile_b_target, _round_up(B, 8))
    Bp = _round_up(B, tile_b)

    x = x.astype(jnp.bfloat16)
    if Bp != B:
        x = jnp.pad(x, ((0, Bp - B), (0, 0)))

    w1, s1 = kparams["w1"], kparams["s1"]
    w2, s2 = kparams["w2"], kparams["s2"]
    w3, s3 = kparams["w3"], kparams["s3"]
    w4, b4 = kparams["w4"], kparams["b4"]
    H1, H2, H3 = w1.shape[1], w2.shape[1], w3.shape[1]

    def const(shape):  # weight-style operand: resident across all grid steps
        return pl.BlockSpec(shape, lambda i: (0, 0))

    grid = (Bp // tile_b,)
    flops = 2 * Bp * (F * H1 + H1 * H2 + H2 * H3 + H3)
    bytes_accessed = (x.size * 2 + Bp * 4
                      + (w1.size + w2.size + w3.size) * 2
                      + (s1.size + s2.size + s3.size + w4.size + 1) * 4)

    out = pl.pallas_call(
        _mlp_kernel,
        out_shape=jax.ShapeDtypeStruct((Bp, 1), jnp.float32),
        grid=grid,
        in_specs=[
            pl.BlockSpec((tile_b, F), lambda i: (i, 0)),   # x: streamed tiles
            const((F, H1)),  const((1, H1)),
            const((H1, H2)), const((1, H2)),
            const((H2, H3)), const((1, H3)),
            const((1, H3)),  const((1, 1)),
        ],
        out_specs=pl.BlockSpec((tile_b, 1), lambda i: (i, 0)),
        compiler_params=pltpu.CompilerParams(
            dimension_semantics=("parallel",),
            vmem_limit_bytes=64 * 1024 * 1024,
        ),
        cost_estimate=pl.CostEstimate(
            flops=flops, transcendentals=Bp, bytes_accessed=bytes_accessed),
    )(x, w1, s1, w2, s2, w3, s3, w4, b4)
    return out[:B]


# ---------------------------- parameter setup -------------------------------
def bn_fold(gamma, beta, mean, var, eps=1e-5):
    scale = gamma / jnp.sqrt(var + eps)
    shift = beta - mean * scale
    return scale, shift


def init_params(key, emb_dims, no_of_cont):
    """Eval-mode 'torch-like' parameters (unfolded, f32)."""
    no_of_embs = sum(d for _, d in emb_dims)
    d_in = no_of_embs + no_of_cont
    keys = iter(jax.random.split(key, 64))

    def nrm(shape, s=0.1):
        return s * jax.random.normal(next(keys), shape, dtype=jnp.float32)

    emb_tables = [nrm((n, d), 1.0) for (n, d) in emb_dims]

    w1, b1 = nrm((d_in, 256)), nrm((256,))
    w2, b2 = nrm((256, 256)), nrm((256,))
    w3, b3 = nrm((256, 64)),  nrm((64,))
    w4, b4 = nrm((64, 1)),    nrm((1,))

    def bn(n):
        gamma = 1.0 + nrm((n,), 0.05)
        beta = nrm((n,), 0.05)
        mean = nrm((n,), 0.05)
        var = 1.0 + jnp.abs(nrm((n,), 0.05))
        return bn_fold(gamma, beta, mean, var)

    s1, sh1 = bn(256)
    s2, sh2 = bn(256)
    s3, sh3 = bn(64)

    # bn_cont as a full-width input affine (identity on embedding features)
    sc_c, sh_c = bn(no_of_cont)
    in_scale = jnp.concatenate([jnp.ones((no_of_embs,), jnp.float32), sc_c])
    in_shift = jnp.concatenate([jnp.zeros((no_of_embs,), jnp.float32), sh_c])

    return dict(
        emb_tables=emb_tables,
        in_scale=in_scale, in_shift=in_shift,
        w1=w1, b1=b1, s1=s1, sh1=sh1,
        w2=w2, b2=b2, s2=s2, sh2=sh2,
        w3=w3, b3=b3, s3=s3, sh3=sh3,
        w4=w4, b4=b4,
    )


def fold_params(params):
    """Fold input affine + biases + eval-mode BatchNorms into the weights."""
    in_sc, in_sh = params["in_scale"], params["in_shift"]
    w1, b1 = params["w1"], params["b1"]
    w2, b2 = params["w2"], params["b2"]
    w3, b3 = params["w3"], params["b3"]
    w4, b4 = params["w4"], params["b4"]
    s1, sh1 = params["s1"], params["sh1"]
    s2, sh2 = params["s2"], params["sh2"]
    s3, sh3 = params["s3"], params["sh3"]

    W1 = (in_sc[:, None] * w1) * s1[None, :]
    S1 = (in_sh @ w1 + b1) * s1 + sh1
    W2 = w2 * s2[None, :]
    S2 = b2 * s2 + sh2
    W3 = w3 * s3[None, :]
    S3 = b3 * s3 + sh3

    return dict(
        w1=W1.astype(jnp.bfloat16), s1=S1.reshape(1, -1).astype(jnp.float32),
        w2=W2.astype(jnp.bfloat16), s2=S2.reshape(1, -1).astype(jnp.float32),
        w3=W3.astype(jnp.bfloat16), s3=S3.reshape(1, -1).astype(jnp.float32),
        w4=w4.reshape(1, -1).astype(jnp.float32),
        b4=b4.reshape(1, 1).astype(jnp.float32),
    )


# ------------------------------- forward pass --------------------------------
def classification_embd_nn_forward(params, kparams, x_cat, x_cont):
    """Eval-mode forward.  x_cat: (B, n_cat) int32, x_cont: (B, C) f32."""
    # TODO(synk): fuse the embedding gather + concat into the Pallas kernel
    # (scalar-prefetched x_cat slice + VMEM-resident tables) to remove the
    # extra HBM round trip of the concatenated feature matrix.
    embs = [jnp.take(tbl, x_cat[:, i], axis=0)
            for i, tbl in enumerate(params["emb_tables"])]
    x = jnp.concatenate(embs + [x_cont], axis=1).astype(jnp.float32)
    # dropout layers are identity in eval mode
    return mlp_forward(x, kparams)


def reference_forward(params, x_cat, x_cont):
    """Pure-JAX f32 reference (unfolded), mirrors the PyTorch module in eval."""
    embs = [jnp.take(tbl, x_cat[:, i], axis=0)
            for i, tbl in enumerate(params["emb_tables"])]
    x = jnp.concatenate(embs + [x_cont], axis=1).astype(jnp.float32)
    x = x * params["in_scale"] + params["in_shift"]
    h = x @ params["w1"] + params["b1"]
    h = jnp.maximum(h * params["s1"] + params["sh1"], 0.0)
    h = h @ params["w2"] + params["b2"]
    h = jnp.maximum(h * params["s2"] + params["sh2"], 0.0)
    h = h @ params["w3"] + params["b3"]
    h = jnp.maximum(h * params["s3"] + params["sh3"], 0.0)
    h = h @ params["w4"] + params["b4"]
    return jax.nn.sigmoid(h)


# --------------------------------- main --------------------------------------
if __name__ == "__main__":
    emb_dims = [(10, 4), (8, 3), (6, 5)]   # (cardinality, emb_dim) per cat col
    no_of_cont = 4
    B = 8

    key = jax.random.PRNGKey(0)
    kp, kc, kx = jax.random.split(key, 3)
    params = init_params(kp, emb_dims, no_of_cont)
    kparams = fold_params(params)

    x_cat = jnp.stack(
        [jax.random.randint(jax.random.fold_in(kc, i), (B,), 0, n)
         for i, (n, _) in enumerate(emb_dims)], axis=1).astype(jnp.int32)
    x_cont = jax.random.normal(kx, (B, no_of_cont), dtype=jnp.float32)

    out = classification_embd_nn_forward(params, kparams, x_cat, x_cont)
    out = jax.block_until_ready(out)

    ref = reference_forward(params, x_cat, x_cont)
    assert out.shape == (B, 1)
    assert bool(jnp.all((out >= 0.0) & (out <= 1.0)))
    assert bool(jnp.allclose(out, ref, atol=5e-2, rtol=5e-2)), (
        f"max abs err {float(jnp.max(jnp.abs(out - ref)))}")
    print("KERNEL_OK")
</pallas_src>

<mosaic_0001>
module attributes {stable_mosaic.version = 11 : i64} {
  func.func @_mlp_kernel(%arg0: i32, %arg1: memref<8x16xbf16, #tpu.memory_space<vmem>>, %arg2: memref<16x256xbf16, #tpu.memory_space<vmem>>, %arg3: memref<1x256xf32, #tpu.memory_space<vmem>>, %arg4: memref<256x256xbf16, #tpu.memory_space<vmem>>, %arg5: memref<1x256xf32, #tpu.memory_space<vmem>>, %arg6: memref<256x64xbf16, #tpu.memory_space<vmem>>, %arg7: memref<1x64xf32, #tpu.memory_space<vmem>>, %arg8: memref<1x64xf32, #tpu.memory_space<vmem>>, %arg9: memref<1x1xf32, #tpu.memory_space<vmem>>, %arg10: memref<8x1xf32, #tpu.memory_space<vmem>>) attributes {dimension_semantics = [#tpu.dimension_semantics<parallel>], iteration_bounds = array<i64: 1>, scalar_prefetch = 0 : i64, scratch_operands = 0 : i64, tpu.core_type = #tpu.core_type<tc>, window_params = [{transform_indices = @transform_0, window_bounds = array<i64: 8, 16>}, {pipeline_mode = #tpu.pipeline_mode<synchronous>, transform_indices = @transform_1, window_bounds = array<i64: 16, 256>}, {pipeline_mode = #tpu.pipeline_mode<synchronous>, transform_indices = @transform_2, window_bounds = array<i64: 1, 256>}, {pipeline_mode = #tpu.pipeline_mode<synchronous>, transform_indices = @transform_3, window_bounds = array<i64: 256, 256>}, {pipeline_mode = #tpu.pipeline_mode<synchronous>, transform_indices = @transform_4, window_bounds = array<i64: 1, 256>}, {pipeline_mode = #tpu.pipeline_mode<synchronous>, transform_indices = @transform_5, window_bounds = array<i64: 256, 64>}, {pipeline_mode = #tpu.pipeline_mode<synchronous>, transform_indices = @transform_6, window_bounds = array<i64: 1, 64>}, {pipeline_mode = #tpu.pipeline_mode<synchronous>, transform_indices = @transform_7, window_bounds = array<i64: 1, 64>}, {pipeline_mode = #tpu.pipeline_mode<synchronous>, transform_indices = @transform_8, window_bounds = array<i64: 1, 1>}, {transform_indices = @transform_9, window_bounds = array<i64: 8, 1>}]} {
    %c0 = arith.constant 0 : index
    %c0_0 = arith.constant 0 : index
    %0 = vector.load %arg1[%c0, %c0_0] : memref<8x16xbf16, #tpu.memory_space<vmem>>, vector<8x16xbf16>
    %c0_1 = arith.constant 0 : index
    %c0_2 = arith.constant 0 : index
    %1 = vector.load %arg2[%c0_1, %c0_2] : memref<16x256xbf16, #tpu.memory_space<vmem>>, vector<16x256xbf16>
    %cst = arith.constant dense<0.000000e+00> : vector<8x256xf32>
    %2 = tpu.matmul %0, %1, %cst {dimension_numbers = #tpu.dot_dimension_numbers<[1], [0], [0], [1], [0, 0, 1, 1], [], []>} : vector<8x16xbf16>, vector<16x256xbf16>, vector<8x256xf32> -> vector<8x256xf32>
    %c0_3 = arith.constant 0 : index
    %c0_4 = arith.constant 0 : index
    %3 = vector.load %arg3[%c0_3, %c0_4] : memref<1x256xf32, #tpu.memory_space<vmem>>, vector<1x256xf32>
    %4 = vector.broadcast %3 : vector<1x256xf32> to vector<8x256xf32>
    %5 = arith.addf %2, %4 : vector<8x256xf32>
    %cst_5 = arith.constant 0.000000e+00 : f32
    %6 = vector.broadcast %cst_5 : f32 to vector<8x256xf32>
    %7 = arith.maximumf %5, %6 : vector<8x256xf32>
    %8 = arith.truncf %7 : vector<8x256xf32> to vector<8x256xbf16>
    %c0_6 = arith.constant 0 : index
    %c0_7 = arith.constant 0 : index
    %9 = vector.load %arg4[%c0_6, %c0_7] : memref<256x256xbf16, #tpu.memory_space<vmem>>, vector<256x256xbf16>
    %cst_8 = arith.constant dense<0.000000e+00> : vector<8x256xf32>
    %10 = tpu.matmul %8, %9, %cst_8 {dimension_numbers = #tpu.dot_dimension_numbers<[1], [0], [0], [1], [0, 0, 1, 1], [], []>} : vector<8x256xbf16>, vector<256x256xbf16>, vector<8x256xf32> -> vector<8x256xf32>
    %c0_9 = arith.constant 0 : index
    %c0_10 = arith.constant 0 : index
    %11 = vector.load %arg5[%c0_9, %c0_10] : memref<1x256xf32, #tpu.memory_space<vmem>>, vector<1x256xf32>
    %12 = vector.broadcast %11 : vector<1x256xf32> to vector<8x256xf32>
    %13 = arith.addf %10, %12 : vector<8x256xf32>
    %cst_11 = arith.constant 0.000000e+00 : f32
    %14 = vector.broadcast %cst_11 : f32 to vector<8x256xf32>
    %15 = arith.maximumf %13, %14 : vector<8x256xf32>
    %16 = arith.truncf %15 : vector<8x256xf32> to vector<8x256xbf16>
    %c0_12 = arith.constant 0 : index
    %c0_13 = arith.constant 0 : index
    %17 = vector.load %arg6[%c0_12, %c0_13] : memref<256x64xbf16, #tpu.memory_space<vmem>>, vector<256x64xbf16>
    %cst_14 = arith.constant dense<0.000000e+00> : vector<8x64xf32>
    %18 = tpu.matmul %16, %17, %cst_14 {dimension_numbers = #tpu.dot_dimension_numbers<[1], [0], [0], [1], [0, 0, 1, 1], [], []>} : vector<8x256xbf16>, vector<256x64xbf16>, vector<8x64xf32> -> vector<8x64xf32>
    %c0_15 = arith.constant 0 : index
    %c0_16 = arith.constant 0 : index
    %19 = vector.load %arg7[%c0_15, %c0_16] : memref<1x64xf32, #tpu.memory_space<vmem>>, vector<1x64xf32>
    %20 = vector.broadcast %19 : vector<1x64xf32> to vector<8x64xf32>
    %21 = arith.addf %18, %20 : vector<8x64xf32>
    %cst_17 = arith.constant 0.000000e+00 : f32
    %22 = vector.broadcast %cst_17 : f32 to vector<8x64xf32>
    %23 = arith.maximumf %21, %22 : vector<8x64xf32>
    %c0_18 = arith.constant 0 : index
    %c0_19 = arith.constant 0 : index
    %24 = vector.load %arg8[%c0_18, %c0_19] : memref<1x64xf32, #tpu.memory_space<vmem>>, vector<1x64xf32>
    %25 = vector.broadcast %24 : vector<1x64xf32> to vector<8x64xf32>
    %26 = arith.mulf %23, %25 : vector<8x64xf32>
    %cst_20 = arith.constant dense<0.000000e+00> : vector<8xf32>
    %27 = vector.multi_reduction <add>, %26, %cst_20 [1] : vector<8x64xf32> to vector<8xf32>
    %28 = vector.shape_cast %27 : vector<8xf32> to vector<8x1xf32>
    %c0_21 = arith.constant 0 : index
    %c0_22 = arith.constant 0 : index
    %29 = vector.load %arg9[%c0_21, %c0_22] : memref<1x1xf32, #tpu.memory_space<vmem>>, vector<1x1xf32>
    %30 = vector.broadcast %29 : vector<1x1xf32> to vector<8x1xf32>
    %31 = arith.addf %28, %30 : vector<8x1xf32>
    %32 = arith.negf %31 : vector<8x1xf32>
    %33 = math.exp %32 : vector<8x1xf32>
    %cst_23 = arith.constant 1.000000e+00 : f32
    %34 = vector.broadcast %cst_23 : f32 to vector<8x1xf32>
    %35 = arith.addf %34, %33 : vector<8x1xf32>
    %36 = arith.divf %34, %35 : vector<8x1xf32>
    %c0_24 = arith.constant 0 : index
    %c0_25 = arith.constant 0 : index
    %37 = vector.load %arg10[%c0_24, %c0_25] : memref<8x1xf32, #tpu.memory_space<vmem>>, vector<8x1xf32>
    tpu.vector_store %arg10[%c0_24, %c0_25], %36 {strides = array<i32>} : memref<8x1xf32, #tpu.memory_space<vmem>>, vector<8x1xf32>,
    return
  }
  func.func @transform_0(%arg0: i32) -> (i32, i32) {
    %c0_i32 = arith.constant 0 : i32
    %c0_i32_0 = arith.constant 0 : i32
    return %arg0, %c0_i32 : i32, i32
  }
  func.func @transform_1(%arg0: i32) -> (i32, i32) {
    %c0_i32 = arith.constant 0 : i32
    %c0_i32_0 = arith.constant 0 : i32
    %c0_i32_1 = arith.constant 0 : i32
    return %c0_i32, %c0_i32_0 : i32, i32
  }
  func.func @transform_2(%arg0: i32) -> (i32, i32) {
    %c0_i32 = arith.constant 0 : i32
    %c0_i32_0 = arith.constant 0 : i32
    %c0_i32_1 = arith.constant 0 : i32
    return %c0_i32, %c0_i32_0 : i32, i32
  }
  func.func @transform_3(%arg0: i32) -> (i32, i32) {
    %c0_i32 = arith.constant 0 : i32
    %c0_i32_0 = arith.constant 0 : i32
    %c0_i32_1 = arith.constant 0 : i32
    return %c0_i32, %c0_i32_0 : i32, i32
  }
  func.func @transform_4(%arg0: i32) -> (i32, i32) {
    %c0_i32 = arith.constant 0 : i32
    %c0_i32_0 = arith.constant 0 : i32
    %c0_i32_1 = arith.constant 0 : i32
    return %c0_i32, %c0_i32_0 : i32, i32
  }
  func.func @transform_5(%arg0: i32) -> (i32, i32) {
    %c0_i32 = arith.constant 0 : i32
    %c0_i32_0 = arith.constant 0 : i32
    %c0_i32_1 = arith.constant 0 : i32
    return %c0_i32, %c0_i32_0 : i32, i32
  }
  func.func @transform_6(%arg0: i32) -> (i32, i32) {
    %c0_i32 = arith.constant 0 : i32
    %c0_i32_0 = arith.constant 0 : i32
    %c0_i32_1 = arith.constant 0 : i32
    return %c0_i32, %c0_i32_0 : i32, i32
  }
  func.func @transform_7(%arg0: i32) -> (i32, i32) {
    %c0_i32 = arith.constant 0 : i32
    %c0_i32_0 = arith.constant 0 : i32
    %c0_i32_1 = arith.constant 0 : i32
    return %c0_i32, %c0_i32_0 : i32, i32
  }
  func.func @transform_8(%arg0: i32) -> (i32, i32) {
    %c0_i32 = arith.constant 0 : i32
    %c0_i32_0 = arith.constant 0 : i32
    %c0_i32_1 = arith.constant 0 : i32
    return %c0_i32, %c0_i32_0 : i32, i32
  }
  func.func @transform_9(%arg0: i32) -> (i32, i32) {
    %c0_i32 = arith.constant 0 : i32
    %c0_i32_0 = arith.constant 0 : i32
    return %arg0, %c0_i32 : i32, i32
  }
}

</mosaic_0001>

<llo_original>
// kernel: tpu_custom_call.1
$region0: #{tpu_custom_call.1}
  #allocation0 [shape = 'u32[]', space=smem, size = 0x4, offset = 0x4, fixed_abs, tag = 'smem constant byte address 0x4 - core index']
  #allocation1 [shape = 'u32[144,128]{1,0:T(1,128)}', space=vmem, size = 0x12000, scoped, tag = 'internal scratch']
  #allocation2 [shape = 'f32[1,1]{1,0:T(1,128)S(1)}', space=vmem, size = 0x200, scoped, tag = 'scoped memory for tpu_custom_call.1']
  %s0 = inlined_call_operand.hbm [shape: bf16[8,16], index: 0, kind: input, shape index: {}]
  %s1 = inlined_call_operand.hbm [shape: bf16[16,256], index: 1, kind: input, shape index: {}]
  %s2 = inlined_call_operand.hbm [shape: f32[1,256], index: 2, kind: input, shape index: {}]
  %s3 = inlined_call_operand.hbm [shape: bf16[256,256], index: 3, kind: input, shape index: {}]
  %s4 = inlined_call_operand.hbm [shape: f32[1,256], index: 4, kind: input, shape index: {}]
  %s5 = inlined_call_operand.hbm [shape: bf16[256,64], index: 5, kind: input, shape index: {}]
  %s6 = inlined_call_operand.hbm [shape: f32[1,64], index: 6, kind: input, shape index: {}]
  %s7 = inlined_call_operand.hbm [shape: f32[1,64], index: 7, kind: input, shape index: {}]
  %s8 = inlined_call_operand.<no memory space> [shape: f32[1,1], index: 8, kind: input, shape index: {}]
  %s9 = inlined_call_operand.hbm [shape: f32[8,1], index: 9, kind: output, shape index: {}]
  %s10 = sld [smem:[#allocation0]]
  $region78: #{tpu_custom_call.1} parent=0
    _
  %s12 = ssub.s32 1, %s10
  %s13 = scalar_select 0, %s12, %s10
  %v14 = vstv %s8
  %15 = vst [vmem:[#allocation2] sm:$0x1] %v14
  $region1: #{tpu_custom_call.1} parent=0
    #allocation3 [shape = 'u8[2048]{0}', space=vmem, size = 0x800, scoped, tag = 'input window, operand 0, single buffered']
    #allocation4 [shape = 's32[1]{0}', space=sflag, size = 0x4, scoped, tag = 'scoped memory for tpu_custom_call.1']
    #allocation5 [shape = 's32[1]{0}', space=sflag, size = 0x4, scoped, tag = 'scoped memory for tpu_custom_call.1']
    #allocation6 [shape = 'u8[8192]{0}', space=vmem, size = 0x2000, scoped, tag = 'input window, operand 1, single buffered']
    #allocation7 [shape = 's32[1]{0}', space=sflag, size = 0x4, scoped, tag = 'scoped memory for tpu_custom_call.1']
    #allocation8 [shape = 'u8[1024]{0}', space=vmem, size = 0x400, scoped, tag = 'input window, operand 2, single buffered']
    #allocation9 [shape = 'u8[131072]{0}', space=vmem, size = 0x20000, scoped, tag = 'input window, operand 3, single buffered']
    #allocation10 [shape = 's32[1]{0}', space=sflag, size = 0x4, scoped, tag = 'scoped memory for tpu_custom_call.1']
    #allocation11 [shape = 'u8[1024]{0}', space=vmem, size = 0x400, scoped, tag = 'input window, operand 4, single buffered']
    #allocation12 [shape = 'u8[65536]{0}', space=vmem, size = 0x10000, scoped, tag = 'input window, operand 5, single buffered']
    #allocation13 [shape = 's32[1]{0}', space=sflag, size = 0x4, scoped, tag = 'scoped memory for tpu_custom_call.1']
    #allocation14 [shape = 'u8[512]{0}', space=vmem, size = 0x400, scoped, tag = 'input window, operand 6, single buffered']
    #allocation15 [shape = 'u8[512]{0}', space=vmem, size = 0x400, scoped, tag = 'input window, operand 7, single buffered']
    #allocation16 [shape = 's32[1]{0}', space=sflag, size = 0x4, scoped, tag = 'scoped memory for tpu_custom_call.1']
    #allocation17 [shape = 'u8[4096]{0}', space=vmem, size = 0x1000, scoped, tag = 'output window, operand 0, single buffered']
    %16 = vsyncpa [#allocation4], 0
    %17 = vsyncpa [#allocation7], 0
    %18 = vsyncpa [#allocation10], 0
    %19 = vsyncpa [#allocation13], 0
    %20 = vsyncpa [#allocation16], 0
    %21 = vsyncpa [#allocation5], 0
    // Predicated region
    $region2: #{tpu_custom_call.1} parent=1 // pred_check
      _
    $region3: #{tpu_custom_call.1} parent=1 // pred_check_branch
      %23 = sbr.rel (0) target = $region5
    $region4: #{tpu_custom_call.1} parent=1 // pred_region
      %s25 = ssub.s32 64, 64
      %26 = vsyncadd [#allocation4], %s25
      %s28 = sshll.u32 [#allocation3], 4
      %s29 = int_to_ptr.vmem [resolvable:$true] %s28
      %31 = dma.hbm_to_vmem [thread:$0]  %s0, 64, %s29, [#allocation4]
    $region5: #{tpu_custom_call.1} parent=1 // pred_fallthru
      _
    // Predicated region
    $region6: #{tpu_custom_call.1} parent=1 // pred_check
      _
    $region7: #{tpu_custom_call.1} parent=1 // pred_check_branch
      %33 = sbr.rel (0) target = $region9
    $region8: #{tpu_custom_call.1} parent=1 // pred_region
      %s35 = ssub.s32 256, 256
      %36 = vsyncadd [#allocation7], %s35
      %s37 = sshll.u32 [#allocation6], 4
      %s38 = int_to_ptr.vmem [resolvable:$true] %s37
      %43 = dma.hbm_to_vmem [thread:$0]  %s1, 256, %s38, [#allocation7], 128, 128, 8
    $region9: #{tpu_custom_call.1} parent=1 // pred_fallthru
      _
    // Predicated region
    $region10: #{tpu_custom_call.1} parent=1 // pred_check
      _
    $region11: #{tpu_custom_call.1} parent=1 // pred_check_branch
      %45 = sbr.rel (0) target = $region13
    $region12: #{tpu_custom_call.1} parent=1 // pred_region
      %s47 = ssub.s32 32, 32
      %48 = vsyncadd [#allocation7], %s47
      %s50 = sshll.u32 [#allocation8], 4
      %s51 = int_to_ptr.vmem [resolvable:$true] %s50
      %53 = dma.hbm_to_vmem [thread:$0]  %s2, 32, %s51, [#allocation7]
    $region13: #{tpu_custom_call.1} parent=1 // pred_fallthru
      _
    // Predicated region
    $region14: #{tpu_custom_call.1} parent=1 // pred_check
      _
    $region15: #{tpu_custom_call.1} parent=1 // pred_check_branch
      %55 = sbr.rel (0) target = $region17
    $region16: #{tpu_custom_call.1} parent=1 // pred_region
      %s57 = ssub.s32 4096, 4096
      %58 = vsyncadd [#allocation10], %s57
      %s59 = sshll.u32 [#allocation9], 4
      %s60 = int_to_ptr.vmem [resolvable:$true] %s59
      %65 = dma.hbm_to_vmem [thread:$0]  %s3, 4096, %s60, [#allocation10], 128, 128, 8
    $region17: #{tpu_custom_call.1} parent=1 // pred_fallthru
      _
    // Predicated region
    $region18: #{tpu_custom_call.1} parent=1 // pred_check
      _
    $region19: #{tpu_custom_call.1} parent=1 // pred_check_branch
      %67 = sbr.rel (0) target = $region21
    $region20: #{tpu_custom_call.1} parent=1 // pred_region
      %s69 = ssub.s32 32, 32
      %70 = vsyncadd [#allocation10], %s69
      %s72 = sshll.u32 [#allocation11], 4
      %s73 = int_to_ptr.vmem [resolvable:$true] %s72
      %75 = dma.hbm_to_vmem [thread:$0]  %s4, 32, %s73, [#allocation10]
    $region21: #{tpu_custom_call.1} parent=1 // pred_fallthru
      _
    // Predicated region
    $region22: #{tpu_custom_call.1} parent=1 // pred_check
      _
    $region23: #{tpu_custom_call.1} parent=1 // pred_check_branch
      %77 = sbr.rel (0) target = $region25
    $region24: #{tpu_custom_call.1} parent=1 // pred_region
      %s79 = ssub.s32 2048, 2048
      %80 = vsyncadd [#allocation13], %s79
      %s81 = sshll.u32 [#allocation12], 4
      %s82 = int_to_ptr.vmem [resolvable:$true] %s81
      %87 = dma.hbm_to_vmem [thread:$0]  %s5, 2048, %s82, [#allocation13], 64, 64, 4
    $region25: #{tpu_custom_call.1} parent=1 // pred_fallthru
      _
    // Predicated region
    $region26: #{tpu_custom_call.1} parent=1 // pred_check
      _
    $region27: #{tpu_custom_call.1} parent=1 // pred_check_branch
      %89 = sbr.rel (0) target = $region29
    $region28: #{tpu_custom_call.1} parent=1 // pred_region
      %s91 = ssub.s32 16, 16
      %92 = vsyncadd [#allocation13], %s91
      %s94 = sshll.u32 [#allocation14], 4
      %s95 = int_to_ptr.vmem [resolvable:$true] %s94
      %97 = dma.hbm_to_vmem [thread:$0]  %s6, 16, %s95, [#allocation13]
    $region29: #{tpu_custom_call.1} parent=1 // pred_fallthru
      _
    // Predicated region
    $region30: #{tpu_custom_call.1} parent=1 // pred_check
      _
    $region31: #{tpu_custom_call.1} parent=1 // pred_check_branch
      %99 = sbr.rel (0) target = $region33
    $region32: #{tpu_custom_call.1} parent=1 // pred_region
      %s101 = ssub.s32 16, 16
      %102 = vsyncadd [#allocation16], %s101
      %s104 = sshll.u32 [#allocation15], 4
      %s105 = int_to_ptr.vmem [resolvable:$true] %s104
      %107 = dma.hbm_to_vmem [thread:$0]  %s7, 16, %s105, [#allocation16]
    $region33: #{tpu_custom_call.1} parent=1 // pred_fallthru
      _
    // Predicated region
    $region34: #{tpu_custom_call.1} parent=1 // pred_check
      _
    $region35: #{tpu_custom_call.1} parent=1 // pred_check_branch
      %109 = sbr.rel (0) target = $region37
    $region36: #{tpu_custom_call.1} parent=1 // pred_region
      _
    $region37: #{tpu_custom_call.1} parent=1 // pred_fallthru
      _
    // Predicated region
    $region38: #{tpu_custom_call.1} parent=1 // pred_check
      _
    $region39: #{tpu_custom_call.1} parent=1 // pred_check_branch
      %111 = sbr.rel (0) target = $region41
    $region40: #{tpu_custom_call.1} parent=1 // pred_region
      %112 = dma.done [#allocation4], 64
    $region41: #{tpu_custom_call.1} parent=1 // pred_fallthru
      _
    // Predicated region
    $region42: #{tpu_custom_call.1} parent=1 // pred_check
      _
    $region43: #{tpu_custom_call.1} parent=1 // pred_check_branch
      %114 = sbr.rel (0) target = $region45
    $region44: #{tpu_custom_call.1} parent=1 // pred_region
      %115 = dma.done [#allocation7], 256
    $region45: #{tpu_custom_call.1} parent=1 // pred_fallthru
      _
    // Predicated region
    $region46: #{tpu_custom_call.1} parent=1 // pred_check
      _
    $region47: #{tpu_custom_call.1} parent=1 // pred_check_branch
      %117 = sbr.rel (0) target = $region49
    $region48: #{tpu_custom_call.1} parent=1 // pred_region
      %118 = dma.done [#allocation7], 32
    $region49: #{tpu_custom_call.1} parent=1 // pred_fallthru
      _
    // Predicated region
    $region50: #{tpu_custom_call.1} parent=1 // pred_check
      _
    $region51: #{tpu_custom_call.1} parent=1 // pred_check_branch
      %120 = sbr.rel (0) target = $region53
    $region52: #{tpu_custom_call.1} parent=1 // pred_region
      %121 = dma.done [#allocation10], 4096
    $region53: #{tpu_custom_call.1} parent=1 // pred_fallthru
      _
    // Predicated region
    $region54: #{tpu_custom_call.1} parent=1 // pred_check
      _
    $region55: #{tpu_custom_call.1} parent=1 // pred_check_branch
      %123 = sbr.rel (0) target = $region57
    $region56: #{tpu_custom_call.1} parent=1 // pred_region
      %124 = dma.done [#allocation10], 32
    $region57: #{tpu_custom_call.1} parent=1 // pred_fallthru
      _
    // Predicated region
    $region58: #{tpu_custom_call.1} parent=1 // pred_check
      _
    $region59: #{tpu_custom_call.1} parent=1 // pred_check_branch
      %126 = sbr.rel (0) target = $region61
    $region60: #{tpu_custom_call.1} parent=1 // pred_region
      %127 = dma.done [#allocation13], 2048
    $region61: #{tpu_custom_call.1} parent=1 // pred_fallthru
      _
    // Predicated region
    $region62: #{tpu_custom_call.1} parent=1 // pred_check
      _
    $region63: #{tpu_custom_call.1} parent=1 // pred_check_branch
      %129 = sbr.rel (0) target = $region65
    $region64: #{tpu_custom_call.1} parent=1 // pred_region
      %130 = dma.done [#allocation13], 16
    $region65: #{tpu_custom_call.1} parent=1 // pred_fallthru
      _
    // Predicated region
    $region66: #{tpu_custom_call.1} parent=1 // pred_check
      _
    $region67: #{tpu_custom_call.1} parent=1 // pred_check_branch
      %132 = sbr.rel (0) target = $region69
    $region68: #{tpu_custom_call.1} parent=1 // pred_region
      %133 = dma.done [#allocation16], 16
    $region69: #{tpu_custom_call.1} parent=1 // pred_fallthru
      _
    %v135 = vld [vmem:[#allocation3] sm:$0xf]
    %v136 = vld [vmem:[#allocation6] sm:$0xff]
    %v137 = vld [vmem:[#allocation6 + $0x8] sm:$0xff]
    %v138 = vld [vmem:[#allocation8] sm:$0x3]
    %v140 = vlaneseq
    %v141 = vshrl.u32 %v140, 7
    %v142 = vsub.s32 0, %v141
    %v143 = vrot.slane %v138, %v142
    %v144 = vlaneseq
    %v145 = vshrl.u32 %v144, 7
    %v146 = vsub.s32 1, %v145
    %v147 = vrot.slane %v138, %v146
    %v152 = vunpack.c.l.b16 %v136
    %v153 = vunpack.c.h.b16 %v136
    %v154 = vunpack.c.l.b16 %v137
    %v155 = vunpack.c.h.b16 %v137
    %v156 = vpack.c.b16 %v154, %v152
    %v157 = vpack.c.b16 %v155, %v153
    %vm160 = vcmask 130048
    %v162 = vsel %vm160, %v135, 0
    %164 = vmatprep.subr.bf16.mxu0 %v157
    %165 = vmatpush1.bf16.msra.mxu0 %v156
    %166 = vmatprep.subr.bf16.mxu0 0
    %167 = vmatpush1.bf16.msra.mxu0 0
    %168 = vmatprep.subr.bf16.mxu0 0
    %169 = vmatpush1.bf16.msra.mxu0 0
    %170 = vmatprep.subr.bf16.mxu0 0
    %171 = vmatpush1.bf16.msra.mxu0 0
    %172 = vmatprep.subr.bf16.mxu0 0
    %173 = vmatpush1.bf16.msra.mxu0 0
    %174 = vmatprep.subr.bf16.mxu0 0
    %175 = vmatpush1.bf16.msra.mxu0 0
    %176 = vmatprep.subr.bf16.mxu0 0
    %177 = vmatpush1.bf16.msra.mxu0 0
    %178 = vmatprep.subr.bf16.mxu0 0
    %179 = vmatpush1.bf16.msra.mxu0 0
    %180 = vmatprep.subr.bf16.mxu0 0
    %181 = vmatpush1.bf16.msra.mxu0 0
    %182 = vmatprep.subr.bf16.mxu0 0
    %183 = vmatpush1.bf16.msra.mxu0 0
    %184 = vmatprep.subr.bf16.mxu0 0
    %185 = vmatpush1.bf16.msra.mxu0 0
    %186 = vmatprep.subr.bf16.mxu0 0
    %187 = vmatpush1.bf16.msra.mxu0 0
    %188 = vmatprep.subr.bf16.mxu0 0
    %189 = vmatpush1.bf16.msra.mxu0 0
    %190 = vmatprep.subr.bf16.mxu0 0
    %191 = vmatpush1.bf16.msra.mxu0 0
    %192 = vmatprep.subr.bf16.mxu0 0
    %193 = vmatpush1.bf16.msra.mxu0 0
    %194 = vmatprep.subr.bf16.mxu0 0
    %195 = vmatpush1.bf16.msra.mxu0 0
    %196 = vmatprep.mubr.bf16.mxu0 0
    %197 = vmatmul.mubr.bf16.gmra.mrb[0].mxu0 %v162
    %v198 = vpop.f32.mrb[0].mxu0
    %v199 = vadd.f32 %v143, %v198
    %v200 = vpop.f32.mrb[0].mxu0
    %v201 = vadd.f32 %v147, %v200
    %v202 = vpop.f32.mrb[0].mxu0
    %v203 = vpop.f32.mrb[0].mxu0
    %204 = vdwg.mxu0
    %v205 = vmax.f32 %v199, 0.0
    %v206 = vmax.f32 %v201, 0.0
    %v207 = vpack.c.bf16 %v205, %v205
    %v208 = vpack.c.bf16 %v206, %v206
    %v209 = vld [vmem:[#allocation9] sm:$0xff]
    %v210 = vld [vmem:[#allocation9 + $0x8] sm:$0xff]
    %v211 = vld [vmem:[#allocation9 + $0x10] sm:$0xff]
    %v212 = vld [vmem:[#allocation9 + $0x18] sm:$0xff]
    %v213 = vld [vmem:[#allocation9 + $0x20] sm:$0xff]
    %v214 = vld [vmem:[#allocation9 + $0x28] sm:$0xff]
    %v215 = vld [vmem:[#allocation9 + $0x30] sm:$0xff]
    %v216 = vld [vmem:[#allocation9 + $0x38] sm:$0xff]
    %v217 = vld [vmem:[#allocation9 + $0x40] sm:$0xff]
    %v218 = vld [vmem:[#allocation9 + $0x48] sm:$0xff]
    %v219 = vld [vmem:[#allocation9 + $0x50] sm:$0xff]
    %v220 = vld [vmem:[#allocation9 + $0x58] sm:$0xff]
    %v221 = vld [vmem:[#allocation9 + $0x60] sm:$0xff]
    %v222 = vld [vmem:[#allocation9 + $0x68] sm:$0xff]
    %v223 = vld [vmem:[#allocation9 + $0x70] sm:$0xff]
    %v224 = vld [vmem:[#allocation9 + $0x78] sm:$0xff]
    %v225 = vld [vmem:[#allocation9 + $0x80] sm:$0xff]
    %v226 = vld [vmem:[#allocation9 + $0x88] sm:$0xff]
    %v227 = vld [vmem:[#allocation9 + $0x90] sm:$0xff]
    %v228 = vld [vmem:[#allocation9 + $0x98] sm:$0xff]
    %v229 = vld [vmem:[#allocation9 + $0xa0] sm:$0xff]
    %v230 = vld [vmem:[#allocation9 + $0xa8] sm:$0xff]
    %v231 = vld [vmem:[#allocation9 + $0xb0] sm:$0xff]
    %v232 = vld [vmem:[#allocation9 + $0xb8] sm:$0xff]
    %v233 = vld [vmem:[#allocation9 + $0xc0] sm:$0xff]
    %v234 = vld [vmem:[#allocation9 + $0xc8] sm:$0xff]
    %v235 = vld [vmem:[#allocation9 + $0xd0] sm:$0xff]
    %v236 = vld [vmem:[#allocation9 + $0xd8] sm:$0xff]
    %v237 = vld [vmem:[#allocation9 + $0xe0] sm:$0xff]
    %v238 = vld [vmem:[#allocation9 + $0xe8] sm:$0xff]
    %v239 = vld [vmem:[#allocation9 + $0xf0] sm:$0xff]
    %v240 = vld [vmem:[#allocation9 + $0xf8] sm:$0xff]
    %v241 = vld [vmem:[#allocation11] sm:$0x3]
    %v243 = vlaneseq
    %v244 = vshrl.u32 %v243, 7
    %v245 = vsub.s32 0, %v244
    %v246 = vrot.slane %v241, %v245
    %v247 = vlaneseq
    %v248 = vshrl.u32 %v247, 7
    %v249 = vsub.s32 1, %v248
    %v250 = vrot.slane %v241, %v249
    %v285 = vunpack.c.l.b16 %v209
    %v286 = vunpack.c.h.b16 %v209
    %v287 = vunpack.c.l.b16 %v210
    %v288 = vunpack.c.h.b16 %v210
    %v289 = vunpack.c.l.b16 %v211
    %v290 = vunpack.c.h.b16 %v211
    %v291 = vunpack.c.l.b16 %v212
    %v292 = vunpack.c.h.b16 %v212
    %v293 = vunpack.c.l.b16 %v213
    %v294 = vunpack.c.h.b16 %v213
    %v295 = vunpack.c.l.b16 %v214
    %v296 = vunpack.c.h.b16 %v214
    %v297 = vunpack.c.l.b16 %v215
    %v298 = vunpack.c.h.b16 %v215
    %v299 = vunpack.c.l.b16 %v216
    %v300 = vunpack.c.h.b16 %v216
    %v301 = vunpack.c.l.b16 %v217
    %v302 = vunpack.c.h.b16 %v217
    %v303 = vunpack.c.l.b16 %v218
    %v304 = vunpack.c.h.b16 %v218
    %v305 = vunpack.c.l.b16 %v219
    %v306 = vunpack.c.h.b16 %v219
    %v307 = vunpack.c.l.b16 %v220
    %v308 = vunpack.c.h.b16 %v220
    %v309 = vunpack.c.l.b16 %v221
    %v310 = vunpack.c.h.b16 %v221
    %v311 = vunpack.c.l.b16 %v222
    %v312 = vunpack.c.h.b16 %v222
    %v313 = vunpack.c.l.b16 %v223
    %v314 = vunpack.c.h.b16 %v223
    %v315 = vunpack.c.l.b16 %v224
    %v316 = vunpack.c.h.b16 %v224
    %v317 = vunpack.c.l.b16 %v225
    %v318 = vunpack.c.h.b16 %v225
    %v319 = vunpack.c.l.b16 %v226
    %v320 = vunpack.c.h.b16 %v226
    %v321 = vunpack.c.l.b16 %v227
    %v322 = vunpack.c.h.b16 %v227
    %v323 = vunpack.c.l.b16 %v228
    %v324 = vunpack.c.h.b16 %v228
    %v325 = vunpack.c.l.b16 %v229
    %v326 = vunpack.c.h.b16 %v229
    %v327 = vunpack.c.l.b16 %v230
    %v328 = vunpack.c.h.b16 %v230
    %v329 = vunpack.c.l.b16 %v231
    %v330 = vunpack.c.h.b16 %v231
    %v331 = vunpack.c.l.b16 %v232
    %v332 = vunpack.c.h.b16 %v232
    %v333 = vunpack.c.l.b16 %v233
    %v334 = vunpack.c.h.b16 %v233
    %v335 = vunpack.c.l.b16 %v234
    %v336 = vunpack.c.h.b16 %v234
    %v337 = vunpack.c.l.b16 %v235
    %v338 = vunpack.c.h.b16 %v235
    %v339 = vunpack.c.l.b16 %v236
    %v340 = vunpack.c.h.b16 %v236
    %v341 = vunpack.c.l.b16 %v237
    %v342 = vunpack.c.h.b16 %v237
    %v343 = vunpack.c.l.b16 %v238
    %v344 = vunpack.c.h.b16 %v238
    %v345 = vunpack.c.l.b16 %v239
    %v346 = vunpack.c.h.b16 %v239
    %v347 = vunpack.c.l.b16 %v240
    %v348 = vunpack.c.h.b16 %v240
    %v349 = vpack.c.b16 %v287, %v285
    %v350 = vpack.c.b16 %v288, %v286
    %v351 = vpack.c.b16 %v291, %v289
    %v352 = vpack.c.b16 %v292, %v290
    %v353 = vpack.c.b16 %v295, %v293
    %v354 = vpack.c.b16 %v296, %v294
    %v355 = vpack.c.b16 %v299, %v297
    %v356 = vpack.c.b16 %v300, %v298
    %v357 = vpack.c.b16 %v303, %v301
    %v358 = vpack.c.b16 %v304, %v302
    %v359 = vpack.c.b16 %v307, %v305
    %v360 = vpack.c.b16 %v308, %v306
    %v361 = vpack.c.b16 %v311, %v309
    %v362 = vpack.c.b16 %v312, %v310
    %v363 = vpack.c.b16 %v315, %v313
    %v364 = vpack.c.b16 %v316, %v314
    %v365 = vpack.c.b16 %v319, %v317
    %v366 = vpack.c.b16 %v320, %v318
    %v367 = vpack.c.b16 %v323, %v321
    %v368 = vpack.c.b16 %v324, %v322
    %v369 = vpack.c.b16 %v327, %v325
    %v370 = vpack.c.b16 %v328, %v326
    %v371 = vpack.c.b16 %v331, %v329
    %v372 = vpack.c.b16 %v332, %v330
    %v373 = vpack.c.b16 %v335, %v333
    %v374 = vpack.c.b16 %v336, %v334
    %v375 = vpack.c.b16 %v339, %v337
    %v376 = vpack.c.b16 %v340, %v338
    %v377 = vpack.c.b16 %v343, %v341
    %v378 = vpack.c.b16 %v344, %v342
    %v379 = vpack.c.b16 %v347, %v345
    %v380 = vpack.c.b16 %v348, %v346
    %413 = vmatprep.subr.bf16.mxu0 %v350
    %414 = vmatpush1.bf16.msra.mxu0 %v349
    %415 = vmatprep.subr.bf16.mxu0 %v352
    %416 = vmatpush1.bf16.msra.mxu0 %v351
    %417 = vmatprep.subr.bf16.mxu0 %v354
    %418 = vmatpush1.bf16.msra.mxu0 %v353
    %419 = vmatprep.subr.bf16.mxu0 %v356
    %420 = vmatpush1.bf16.msra.mxu0 %v355
    %421 = vmatprep.subr.bf16.mxu0 %v358
    %422 = vmatpush1.bf16.msra.mxu0 %v357
    %423 = vmatprep.subr.bf16.mxu0 %v360
    %424 = vmatpush1.bf16.msra.mxu0 %v359
    %425 = vmatprep.subr.bf16.mxu0 %v362
    %426 = vmatpush1.bf16.msra.mxu0 %v361
    %427 = vmatprep.subr.bf16.mxu0 %v364
    %428 = vmatpush1.bf16.msra.mxu0 %v363
    %429 = vmatprep.subr.bf16.mxu0 %v366
    %430 = vmatpush1.bf16.msra.mxu0 %v365
    %431 = vmatprep.subr.bf16.mxu0 %v368
    %432 = vmatpush1.bf16.msra.mxu0 %v367
    %433 = vmatprep.subr.bf16.mxu0 %v370
    %434 = vmatpush1.bf16.msra.mxu0 %v369
    %435 = vmatprep.subr.bf16.mxu0 %v372
    %436 = vmatpush1.bf16.msra.mxu0 %v371
    %437 = vmatprep.subr.bf16.mxu0 %v374
    %438 = vmatpush1.bf16.msra.mxu0 %v373
    %439 = vmatprep.subr.bf16.mxu0 %v376
    %440 = vmatpush1.bf16.msra.mxu0 %v375
    %441 = vmatprep.subr.bf16.mxu0 %v378
    %442 = vmatpush1.bf16.msra.mxu0 %v377
    %443 = vmatprep.subr.bf16.mxu0 %v380
    %444 = vmatpush1.bf16.msra.mxu0 %v379
    %445 = vmatprep.mubr.bf16.mxu0 %v208
    %446 = vmatmul.mubr.bf16.gmra.mrb[0].mxu0 %v207
    %v447 = vpop.f32.mrb[0].mxu0
    %v448 = vadd.f32 %v246, %v447
    %v449 = vpop.f32.mrb[0].mxu0
    %v450 = vadd.f32 %v250, %v449
    %v451 = vpop.f32.mrb[0].mxu0
    %v452 = vpop.f32.mrb[0].mxu0
    %453 = vdwg.mxu0
    %v454 = vmax.f32 %v448, 0.0
    %v455 = vmax.f32 %v450, 0.0
    %v456 = vpack.c.bf16 %v454, %v454
    %v457 = vpack.c.bf16 %v455, %v455
    %v458 = vld [vmem:[#allocation12] sm:$0xf]
    %v459 = vld [vmem:[#allocation12 + $0x4] sm:$0xf]
    %v460 = vld [vmem:[#allocation12 + $0x8] sm:$0xf]
    %v461 = vld [vmem:[#allocation12 + $0xc] sm:$0xf]
    %v462 = vld [vmem:[#allocation12 + $0x10] sm:$0xf]
    %v463 = vld [vmem:[#allocation12 + $0x14] sm:$0xf]
    %v464 = vld [vmem:[#allocation12 + $0x18] sm:$0xf]
    %v465 = vld [vmem:[#allocation12 + $0x1c] sm:$0xf]
    %v466 = vld [vmem:[#allocation12 + $0x20] sm:$0xf]
    %v467 = vld [vmem:[#allocation12 + $0x24] sm:$0xf]
    %v468 = vld [vmem:[#allocation12 + $0x28] sm:$0xf]
    %v469 = vld [vmem:[#allocation12 + $0x2c] sm:$0xf]
    %v470 = vld [vmem:[#allocation12 + $0x30] sm:$0xf]
    %v471 = vld [vmem:[#allocation12 + $0x34] sm:$0xf]
    %v472 = vld [vmem:[#allocation12 + $0x38] sm:$0xf]
    %v473 = vld [vmem:[#allocation12 + $0x3c] sm:$0xf]
    %v474 = vld [vmem:[#allocation12 + $0x40] sm:$0xf]
    %v475 = vld [vmem:[#allocation12 + $0x44] sm:$0xf]
    %v476 = vld [vmem:[#allocation12 + $0x48] sm:$0xf]
    %v477 = vld [vmem:[#allocation12 + $0x4c] sm:$0xf]
    %v478 = vld [vmem:[#allocation12 + $0x50] sm:$0xf]
    %v479 = vld [vmem:[#allocation12 + $0x54] sm:$0xf]
    %v480 = vld [vmem:[#allocation12 + $0x58] sm:$0xf]
    %v481 = vld [vmem:[#allocation12 + $0x5c] sm:$0xf]
    %v482 = vld [vmem:[#allocation12 + $0x60] sm:$0xf]
    %v483 = vld [vmem:[#allocation12 + $0x64] sm:$0xf]
    %v484 = vld [vmem:[#allocation12 + $0x68] sm:$0xf]
    %v485 = vld [vmem:[#allocation12 + $0x6c] sm:$0xf]
    %v486 = vld [vmem:[#allocation12 + $0x70] sm:$0xf]
    %v487 = vld [vmem:[#allocation12 + $0x74] sm:$0xf]
    %v488 = vld [vmem:[#allocation12 + $0x78] sm:$0xf]
    %v489 = vld [vmem:[#allocation12 + $0x7c] sm:$0xf]
    %v490 = vld [vmem:[#allocation14] sm:$0x1]
    %v492 = vlaneseq
    %v493 = vshrl.u32 %v492, 7
    %v494 = vsub.s32 0, %v493
    %v495 = vrot.slane %v490, %v494
    %v529 = vunpack.c.l.b16 %v458
    %v530 = vunpack.c.l.b16 %v459
    %v531 = vunpack.c.l.b16 %v460
    %v532 = vunpack.c.l.b16 %v461
    %v533 = vunpack.c.l.b16 %v462
    %v534 = vunpack.c.l.b16 %v463
    %v535 = vunpack.c.l.b16 %v464
    %v536 = vunpack.c.l.b16 %v465
    %v537 = vunpack.c.l.b16 %v466
    %v538 = vunpack.c.l.b16 %v467
    %v539 = vunpack.c.l.b16 %v468
    %v540 = vunpack.c.l.b16 %v469
    %v541 = vunpack.c.l.b16 %v470
    %v542 = vunpack.c.l.b16 %v471
    %v543 = vunpack.c.l.b16 %v472
    %v544 = vunpack.c.l.b16 %v473
    %v545 = vunpack.c.l.b16 %v474
    %v546 = vunpack.c.l.b16 %v475
    %v547 = vunpack.c.l.b16 %v476
    %v548 = vunpack.c.l.b16 %v477
    %v549 = vunpack.c.l.b16 %v478
    %v550 = vunpack.c.l.b16 %v479
    %v551 = vunpack.c.l.b16 %v480
    %v552 = vunpack.c.l.b16 %v481
    %v553 = vunpack.c.l.b16 %v482
    %v554 = vunpack.c.l.b16 %v483
    %v555 = vunpack.c.l.b16 %v484
    %v556 = vunpack.c.l.b16 %v485
    %v557 = vunpack.c.l.b16 %v486
    %v558 = vunpack.c.l.b16 %v487
    %v559 = vunpack.c.l.b16 %v488
    %v560 = vunpack.c.l.b16 %v489
    %v561 = vpack.c.b16 %v530, %v529
    %v562 = vpack.c.b16 %v532, %v531
    %v563 = vpack.c.b16 %v534, %v533
    %v564 = vpack.c.b16 %v536, %v535
    %v565 = vpack.c.b16 %v538, %v537
    %v566 = vpack.c.b16 %v540, %v539
    %v567 = vpack.c.b16 %v542, %v541
    %v568 = vpack.c.b16 %v544, %v543
    %v569 = vpack.c.b16 %v546, %v545
    %v570 = vpack.c.b16 %v548, %v547
    %v571 = vpack.c.b16 %v550, %v549
    %v572 = vpack.c.b16 %v552, %v551
    %v573 = vpack.c.b16 %v554, %v553
    %v574 = vpack.c.b16 %v556, %v555
    %v575 = vpack.c.b16 %v558, %v557
    %v576 = vpack.c.b16 %v560, %v559
    %593 = vmatprep.subr.bf16.mxu0 0
    %594 = vmatpush1.bf16.msra.mxu0 %v561
    %595 = vmatprep.subr.bf16.mxu0 0
    %596 = vmatpush1.bf16.msra.mxu0 %v562
    %597 = vmatprep.subr.bf16.mxu0 0
    %598 = vmatpush1.bf16.msra.mxu0 %v563
    %599 = vmatprep.subr.bf16.mxu0 0
    %600 = vmatpush1.bf16.msra.mxu0 %v564
    %601 = vmatprep.subr.bf16.mxu0 0
    %602 = vmatpush1.bf16.msra.mxu0 %v565
    %603 = vmatprep.subr.bf16.mxu0 0
    %604 = vmatpush1.bf16.msra.mxu0 %v566
    %605 = vmatprep.subr.bf16.mxu0 0
    %606 = vmatpush1.bf16.msra.mxu0 %v567
    %607 = vmatprep.subr.bf16.mxu0 0
    %608 = vmatpush1.bf16.msra.mxu0 %v568
    %609 = vmatprep.subr.bf16.mxu0 0
    %610 = vmatpush1.bf16.msra.mxu0 %v569
    %611 = vmatprep.subr.bf16.mxu0 0
    %612 = vmatpush1.bf16.msra.mxu0 %v570
    %613 = vmatprep.subr.bf16.mxu0 0
    %614 = vmatpush1.bf16.msra.mxu0 %v571
    %615 = vmatprep.subr.bf16.mxu0 0
    %616 = vmatpush1.bf16.msra.mxu0 %v572
    %617 = vmatprep.subr.bf16.mxu0 0
    %618 = vmatpush1.bf16.msra.mxu0 %v573
    %619 = vmatprep.subr.bf16.mxu0 0
    %620 = vmatpush1.bf16.msra.mxu0 %v574
    %621 = vmatprep.subr.bf16.mxu0 0
    %622 = vmatpush1.bf16.msra.mxu0 %v575
    %623 = vmatprep.subr.bf16.mxu0 0
    %624 = vmatpush1.bf16.msra.mxu0 %v576
    %625 = vmatprep.mubr.bf16.mxu0 %v457
    %626 = vmatmul.mubr.bf16.gmra.mrb[0].mxu0 %v456
    %v627 = vpop.f32.mrb[0].mxu0
    %v628 = vadd.f32 %v495, %v627
    %v629 = vpop.f32.mrb[0].mxu0
    %v630 = vpop.f32.mrb[0].mxu0
    %v631 = vpop.f32.mrb[0].mxu0
    %632 = vdwg.mxu0
    %v633 = vmax.f32 %v628, 0.0
    %v634 = vld [vmem:[#allocation15] sm:$0x1]
    %v636 = vlaneseq
    %v637 = vshrl.u32 %v636, 7
    %v638 = vsub.s32 0, %v637
    %v639 = vrot.slane %v634, %v638
    %v641 = vmul.f32 %v633, %v639
    %vm642 = vcmask 523264
    %v643 = vsel %vm642, %v641, 0.0
    %644 = vadd.xlane.f32.xlu0 %v643
    %v645 = vpop.xlane.xlu0 %644
    %v646 = vld [vmem:[#allocation2] sm:$0x1]
    %v648 = vlaneseq
    %v649 = vshrl.u32 %v648, 7
    %v650 = vsub.s32 0, %v649
    %v651 = vrot.slane %v646, %v650
    %v653 = vadd.f32 %v645, %v651
    %v654 = vxor.u32 %v653, 2147483648
    %v655 = vmul.f32 %v654, 1.442695
    %v656 = vpow.pop %v655
    %v657 = vadd.f32 %v656, 1.0
    %v658 = vrcp.pop %v657
    %v659 = vmul.f32 1.0, %v658
    %vm660 = vcmask 7168
    %661 = vst.msk [vmem:[#allocation17] sm:$0xff] %vm660, %v659
    // Predicated region
    $region70: #{tpu_custom_call.1} parent=1 // pred_check
      _
    $region71: #{tpu_custom_call.1} parent=1 // pred_check_branch
      %663 = sbr.rel (0) target = $region73
    $region72: #{tpu_custom_call.1} parent=1 // pred_region
      %s665 = ssub.s32 128, 128
      %666 = vsyncadd [#allocation5], %s665
      %s668 = sshll.u32 [#allocation17], 4
      %s669 = int_to_ptr.vmem [resolvable:$true] %s668
      %671 = dma.vmem_to_hbm [thread:$0]  %s669, 128, %s9, [#allocation5]
    $region73: #{tpu_custom_call.1} parent=1 // pred_fallthru
      _
    // Predicated region
    $region74: #{tpu_custom_call.1} parent=1 // pred_check
      _
    $region75: #{tpu_custom_call.1} parent=1 // pred_check_branch
      %673 = sbr.rel (0) target = $region77
    $region76: #{tpu_custom_call.1} parent=1 // pred_region
      %674 = dma.done [#allocation5], 128
    $region77: #{tpu_custom_call.1} parent=1 // pred_fallthru
      _
    %675 = vsyncpa [#allocation4], 1
    %676 = vsyncpa [#allocation7], 1
    %677 = vsyncpa [#allocation10], 1
    %678 = vsyncpa [#allocation13], 1
    %679 = vsyncpa [#allocation16], 1
    %680 = vsyncpa [#allocation5], 1

</llo_original>
